<compile_context>
chip_gen: v7x
topology: tpu7x:2x2x1
jax: 0.10.0
libtpu: 0.0.40
codegen_flags: <defaults>
</compile_context>

<pallas_src>
import functools
import math

import jax
import jax.numpy as jnp
from jax import lax
from jax.experimental import pallas as pl
from jax.experimental.pallas import tpu as pltpu


def _hash_u32(x):
    """One lowbias32-style mixing round (pure VPU xor/shift/mul on uint32)."""
    x = x ^ (x >> jnp.uint32(16))
    x = x * jnp.uint32(0x7FEB352D)
    x = x ^ (x >> jnp.uint32(15))
    x = x * jnp.uint32(0x846CA68B)
    x = x ^ (x >> jnp.uint32(16))
    return x


@functools.lru_cache(maxsize=1)
def _hw_prng_supported() -> bool:
    """Probe (once) whether pltpu.prng_* lower in the current environment."""
    def _probe(o_ref):
        pltpu.prng_seed(jnp.int32(0))
        raw = pltpu.prng_random_bits(o_ref.shape)
        o_ref[...] = raw if raw.dtype == o_ref.dtype else pltpu.bitcast(raw, o_ref.dtype)

    try:
        out = pl.pallas_call(
            _probe, out_shape=jax.ShapeDtypeStruct((8, 128), jnp.uint32))()
        jax.block_until_ready(out)
        return True
    except Exception:  # any failure -> use the software hash fallback
        return False


def _pos_enc_kernel(seed_ref, x_ref, pe_ref, o_ref, *, batch, drop_threshold,
                    inv_keep, apply_dropout, use_hw_prng):
    # x_ref / o_ref: (ts, B*E) tile.  pe_ref: (ts, E) tile.
    pe_wide = jnp.tile(pe_ref[...], (1, batch))           # broadcast pe over batch
    y = x_ref[...] + pe_wide
    if apply_dropout:
        if use_hw_prng:
            # Distinct PRNG stream per grid step; keeps training mode HBM-bound.
            pltpu.prng_seed(seed_ref[0], pl.program_id(0))
            raw = pltpu.prng_random_bits(y.shape)
            bits = raw if raw.dtype == jnp.uint32 else pltpu.bitcast(raw, jnp.uint32)
        else:
            # Fallback: one hash round over a flat, globally-unique counter
            # (distinct bits per tile and per element; ~3 int32 muls/element).
            ts, cols = y.shape
            row0 = pl.program_id(0) * ts
            r = row0 + lax.broadcasted_iota(jnp.int32, y.shape, 0)
            c = lax.broadcasted_iota(jnp.int32, y.shape, 1)
            uid = pltpu.bitcast(r * cols + c, jnp.uint32)
            seed_mix = seed_ref[0].astype(jnp.uint32) * jnp.uint32(0x9E3779B1)
            bits = _hash_u32(uid ^ seed_mix)
        # Keep with probability 1 - p via integer-threshold compare on raw bits.
        keep = bits >= jnp.uint32(drop_threshold)
        # Scale in f32 so 1/(1-p) is not rounded for low-precision inputs.
        scaled = (y.astype(jnp.float32) * jnp.float32(inv_keep)).astype(y.dtype)
        y = jnp.where(keep, scaled, jnp.zeros_like(y))
    o_ref[...] = y.astype(o_ref.dtype)


def make_positional_encoding_table(embed_dim: int, max_len: int = 5000,
                                   dtype=jnp.float32):
    """Deterministic construction of `pe`, identical to the PyTorch init."""
    position = jnp.arange(max_len, dtype=jnp.float32)[:, None]               # (L,1)
    div_term = jnp.exp(jnp.arange(0, embed_dim, 2, dtype=jnp.float32)
                       * (-math.log(10000.0) / embed_dim))                   # (E/2,)
    pe = jnp.zeros((max_len, embed_dim), dtype=jnp.float32)
    pe = pe.at[:, 0::2].set(jnp.sin(position * div_term))
    pe = pe.at[:, 1::2].set(jnp.cos(position * div_term))
    return pe[:, None, :].astype(dtype)                                      # (L,1,E)


def positional_encoding(x, pe, *, p: float = 0.1, training: bool = True,
                        seed: int = 0, block_rows: int | None = None,
                        use_hw_prng: bool | None = None):
    """x: [seq_len, batch, embed_dim]; pe: [max_len, 1, embed_dim]."""
    S, B, E = x.shape
    x2d = x.reshape(S, B * E)                 # free view of contiguous layout
    pe2d = pe[:S, 0, :].astype(x.dtype)       # (S, E); match x dtype, no promote

    apply_dropout = bool(training) and float(p) > 0.0
    keep_prob = 1.0 - float(p)
    drop_threshold = min(int(round(float(p) * (2 ** 32))), 2 ** 32 - 1)
    inv_keep = (1.0 / keep_prob) if apply_dropout else 1.0

    use_hw = False
    if apply_dropout:
        use_hw = _hw_prng_supported() if use_hw_prng is None else bool(use_hw_prng)

    # ---- tile size over the sequence axis --------------------------------
    itemsize = jnp.dtype(x.dtype).itemsize
    row_bytes = B * E * itemsize
    if block_rows is None:
        target_tile_bytes = 6 * 1024 * 1024   # ~6 MiB of x per grid step
        ts = max(1, target_tile_bytes // row_bytes)
    else:
        ts = max(1, int(block_rows))
    if S >= 16:
        ts = min(ts, pl.cdiv(S, 2))           # >= 2 steps so v7x uses both TCs
    if ts < S:
        ts = max(8, (ts // 8) * 8)            # sublane-aligned second-minor dim
    ts = int(min(ts, S))
    grid = (pl.cdiv(S, ts),)
    # Per-step VMEM budget: 2*(x tile + out tile) + 2*pe tile
    #   = 4*ts*row_bytes + 2*ts*E*itemsize  -> well under the 48 MiB limit.

    kernel = functools.partial(
        _pos_enc_kernel, batch=B, drop_threshold=drop_threshold,
        inv_keep=inv_keep, apply_dropout=apply_dropout, use_hw_prng=use_hw)
    seed_arr = jnp.array([seed], dtype=jnp.int32)

    out2d = pl.pallas_call(
        kernel,
        out_shape=jax.ShapeDtypeStruct((S, B * E), x.dtype),
        grid_spec=pltpu.PrefetchScalarGridSpec(
            num_scalar_prefetch=1,            # seed lands in SMEM
            grid=grid,
            in_specs=[
                # Last block dims equal the full array dims (or multiples of
                # (8,128)); each step DMAs one contiguous lane-dense slab.
                pl.BlockSpec((ts, B * E), lambda i, seed: (i, 0)),
                pl.BlockSpec((ts, E), lambda i, seed: (i, 0)),
            ],
            out_specs=pl.BlockSpec((ts, B * E), lambda i, seed: (i, 0)),
        ),
        compiler_params=pltpu.CompilerParams(
            dimension_semantics=("parallel",),        # independent tiles
            vmem_limit_bytes=48 * 1024 * 1024,
        ),
    )(seed_arr, x2d, pe2d)
    return out2d.reshape(S, B, E)


if __name__ == "__main__":
    key = jax.random.PRNGKey(0)
    # Small shapes consistent with the module: [seq_len, batch, embed_dim]
    S, B, E = 8, 2, 32
    x = jax.random.normal(key, (S, B, E), dtype=jnp.float32)
    pe = make_positional_encoding_table(E, max_len=5000)
    ref = x + pe[:S]

    # Eval mode: dropout is identity -> must match the pure-JAX reference.
    y_eval = positional_encoding(x, pe, p=0.1, training=False)
    jax.block_until_ready(y_eval)
    assert y_eval.shape == (S, B, E)
    assert jnp.allclose(y_eval, ref, atol=1e-6), "eval-mode mismatch vs reference"

    # Training mode: dropped elements are exactly 0, kept ones scaled 1/(1-p).
    p = 0.1
    keep_scale = 1.0 / (1.0 - p)
    y_train = positional_encoding(x, pe, p=p, training=True, seed=42)
    jax.block_until_ready(y_train)
    consistent = jnp.all(jnp.where(y_train == 0.0, True,
                                   jnp.abs(y_train - ref * keep_scale) < 1e-4))
    assert bool(consistent), "training-mode values inconsistent with inverted dropout"

    # Larger problem to exercise the multi-step tiled grid path.
    S2, B2, E2 = 256, 4, 128
    x2 = jax.random.normal(jax.random.PRNGKey(1), (S2, B2, E2), dtype=jnp.float32)
    pe2 = make_positional_encoding_table(E2, max_len=5000)
    ref2 = x2 + pe2[:S2]
    y2_eval = positional_encoding(x2, pe2, p=p, training=False, block_rows=64)
    jax.block_until_ready(y2_eval)
    assert jnp.allclose(y2_eval, ref2, atol=1e-6)
    y2 = positional_encoding(x2, pe2, p=p, training=True, seed=7, block_rows=64)
    jax.block_until_ready(y2)
    consistent2 = jnp.all(jnp.where(y2 == 0.0, True,
                                    jnp.abs(y2 - ref2 * keep_scale) < 1e-3))
    assert bool(consistent2)
    drop_rate = float(jnp.mean((y2 == 0.0).astype(jnp.float32)))
    assert 0.02 < drop_rate < 0.30, f"unreasonable drop rate {drop_rate}"

    print("KERNEL_OK")
</pallas_src>

<mosaic_0001>
module attributes {stable_mosaic.version = 11 : i64} {
  func.func @_pos_enc_kernel(%arg0: i32, %arg1: memref<1xi32, #tpu.memory_space<smem>>, %arg2: memref<8x64xf32, #tpu.memory_space<vmem>>, %arg3: memref<8x32xf32, #tpu.memory_space<vmem>>, %arg4: memref<8x64xf32, #tpu.memory_space<vmem>>) attributes {dimension_semantics = [#tpu.dimension_semantics<parallel>], iteration_bounds = array<i64: 1>, scalar_prefetch = 1 : i64, scratch_operands = 0 : i64, tpu.core_type = #tpu.core_type<tc>, window_params = [{transform_indices = @transform_0, window_bounds = array<i64: 8, 64>}, {transform_indices = @transform_1, window_bounds = array<i64: 8, 32>}, {transform_indices = @transform_2, window_bounds = array<i64: 8, 64>}]} {
    %c0 = arith.constant 0 : index
    %c0_0 = arith.constant 0 : index
    %0 = vector.load %arg3[%c0, %c0_0] : memref<8x32xf32, #tpu.memory_space<vmem>>, vector<8x32xf32>
    %1 = tpu.concatenate %0, %0 in 1 : vector<8x32xf32>, vector<8x32xf32> -> vector<8x64xf32>
    %c0_1 = arith.constant 0 : index
    %c0_2 = arith.constant 0 : index
    %2 = vector.load %arg2[%c0_1, %c0_2] : memref<8x64xf32, #tpu.memory_space<vmem>>, vector<8x64xf32>
    %3 = arith.addf %2, %1 : vector<8x64xf32>
    %c0_3 = arith.constant 0 : index
    %c0_4 = arith.constant 0 : index
    %4 = vector.load %arg4[%c0_3, %c0_4] : memref<8x64xf32, #tpu.memory_space<vmem>>, vector<8x64xf32>
    tpu.vector_store %arg4[%c0_3, %c0_4], %3 {strides = array<i32>} : memref<8x64xf32, #tpu.memory_space<vmem>>, vector<8x64xf32>,
    return
  }
  func.func @transform_0(%arg0: i32, %arg1: memref<1xi32, #tpu.memory_space<smem>>) -> (i32, i32) {
    %c0_i32 = arith.constant 0 : i32
    %c0_i32_0 = arith.constant 0 : i32
    return %arg0, %c0_i32 : i32, i32
  }
  func.func @transform_1(%arg0: i32, %arg1: memref<1xi32, #tpu.memory_space<smem>>) -> (i32, i32) {
    %c0_i32 = arith.constant 0 : i32
    %c0_i32_0 = arith.constant 0 : i32
    return %arg0, %c0_i32 : i32, i32
  }
  func.func @transform_2(%arg0: i32, %arg1: memref<1xi32, #tpu.memory_space<smem>>) -> (i32, i32) {
    %c0_i32 = arith.constant 0 : i32
    %c0_i32_0 = arith.constant 0 : i32
    return %arg0, %c0_i32 : i32, i32
  }
}

</mosaic_0001>

<llo_original>
// kernel: tpu_custom_call.1
$region0: #{tpu_custom_call.1}
  #allocation0 [shape = 'u32[]', space=smem, size = 0x4, offset = 0x4, fixed_abs, tag = 'smem constant byte address 0x4 - core index']
  #allocation1 [shape = 'u32[144,128]{1,0:T(1,128)}', space=vmem, size = 0x12000, scoped, tag = 'internal scratch']
  #allocation2 [shape = 's32[1]{0}', space=sflag, size = 0x4, scoped, tag = 'scoped memory for tpu_custom_call.1']
  #allocation3 [shape = 's32[1]{0:T(128)S(6)}', space=smem, size = 0x200, scoped, tag = 'prefetched SMEM operand 0']
  %s0 = inlined_call_operand.<no memory space> [shape: s32[1], index: 0, kind: input, shape index: {}]
  %s1 = inlined_call_operand.hbm [shape: f32[8,64], index: 1, kind: input, shape index: {}]
  %s2 = inlined_call_operand.hbm [shape: f32[8,32], index: 2, kind: input, shape index: {}]
  %s3 = inlined_call_operand.hbm [shape: f32[8,64], index: 3, kind: output, shape index: {}]
  %s4 = sld [smem:[#allocation0]]
  $region26: #{tpu_custom_call.1} parent=0
    _
  %s6 = ssub.s32 1, %s4
  %s7 = scalar_select 0, %s6, %s4
  %8 = sst [smem:[#allocation3]] %s0
  $region1: #{tpu_custom_call.1} parent=0
    #allocation4 [shape = 'u8[4096]{0}', space=vmem, size = 0x1000, scoped, tag = 'input window, operand 1, single buffered']
    #allocation5 [shape = 's32[1]{0}', space=sflag, size = 0x4, scoped, tag = 'scoped memory for tpu_custom_call.1']
    #allocation6 [shape = 's32[1]{0}', space=sflag, size = 0x4, scoped, tag = 'scoped memory for tpu_custom_call.1']
    #allocation7 [shape = 'u8[4096]{0}', space=vmem, size = 0x1000, scoped, tag = 'input window, operand 2, single buffered']
    #allocation8 [shape = 's32[1]{0}', space=sflag, size = 0x4, scoped, tag = 'scoped memory for tpu_custom_call.1']
    #allocation9 [shape = 'u8[4096]{0}', space=vmem, size = 0x1000, scoped, tag = 'output window, operand 0, single buffered']
    %9 = vsyncpa [#allocation5], 0
    %10 = vsyncpa [#allocation8], 0
    %11 = vsyncpa [#allocation6], 0
    // Predicated region
    $region2: #{tpu_custom_call.1} parent=1 // pred_check
      _
    $region3: #{tpu_custom_call.1} parent=1 // pred_check_branch
      %13 = sbr.rel (0) target = $region5
    $region4: #{tpu_custom_call.1} parent=1 // pred_region
      %s15 = ssub.s32 128, 128
      %16 = vsyncadd [#allocation5], %s15
      %s18 = sshll.u32 [#allocation4], 4
      %s19 = int_to_ptr.vmem [resolvable:$true] %s18
      %21 = dma.hbm_to_vmem [thread:$0]  %s1, 128, %s19, [#allocation5]
    $region5: #{tpu_custom_call.1} parent=1 // pred_fallthru
      _
    // Predicated region
    $region6: #{tpu_custom_call.1} parent=1 // pred_check
      _
    $region7: #{tpu_custom_call.1} parent=1 // pred_check_branch
      %23 = sbr.rel (0) target = $region9
    $region8: #{tpu_custom_call.1} parent=1 // pred_region
      %s25 = ssub.s32 128, 128
      %26 = vsyncadd [#allocation8], %s25
      %s28 = sshll.u32 [#allocation7], 4
      %s29 = int_to_ptr.vmem [resolvable:$true] %s28
      %31 = dma.hbm_to_vmem [thread:$0]  %s2, 128, %s29, [#allocation8]
    $region9: #{tpu_custom_call.1} parent=1 // pred_fallthru
      _
    // Predicated region
    $region10: #{tpu_custom_call.1} parent=1 // pred_check
      _
    $region11: #{tpu_custom_call.1} parent=1 // pred_check_branch
      %33 = sbr.rel (0) target = $region13
    $region12: #{tpu_custom_call.1} parent=1 // pred_region
      %34 = dma.done [#allocation5], 128
    $region13: #{tpu_custom_call.1} parent=1 // pred_fallthru
      _
    // Predicated region
    $region14: #{tpu_custom_call.1} parent=1 // pred_check
      _
    $region15: #{tpu_custom_call.1} parent=1 // pred_check_branch
      %36 = sbr.rel (0) target = $region17
    $region16: #{tpu_custom_call.1} parent=1 // pred_region
      %37 = dma.done [#allocation8], 128
    $region17: #{tpu_custom_call.1} parent=1 // pred_fallthru
      _
    %v38 = vld [vmem:[#allocation7] sm:$0xff]
    %40 = vrot.lane.b32.xlu0 %v38, 32
    %v41 = vpop.permute.xlu0 %40
    %vm43 = vcmask 261120
    %v44 = vsel %vm43, %v38, %v41
    %v45 = vld [vmem:[#allocation4] sm:$0xff]
    %v46 = vadd.f32 %v45, %v44
    %vm47 = vcmask 523264
    %48 = vst.msk [vmem:[#allocation9] sm:$0xff] %vm47, %v46
    // Predicated region
    $region18: #{tpu_custom_call.1} parent=1 // pred_check
      _
    $region19: #{tpu_custom_call.1} parent=1 // pred_check_branch
      %50 = sbr.rel (0) target = $region21
    $region20: #{tpu_custom_call.1} parent=1 // pred_region
      %s52 = ssub.s32 128, 128
      %53 = vsyncadd [#allocation6], %s52
      %s55 = sshll.u32 [#allocation9], 4
      %s56 = int_to_ptr.vmem [resolvable:$true] %s55
      %58 = dma.vmem_to_hbm [thread:$0]  %s56, 128, %s3, [#allocation6]
    $region21: #{tpu_custom_call.1} parent=1 // pred_fallthru
      _
    // Predicated region
    $region22: #{tpu_custom_call.1} parent=1 // pred_check
      _
    $region23: #{tpu_custom_call.1} parent=1 // pred_check_branch
      %60 = sbr.rel (0) target = $region25
    $region24: #{tpu_custom_call.1} parent=1 // pred_region
      %61 = dma.done [#allocation6], 128
    $region25: #{tpu_custom_call.1} parent=1 // pred_fallthru
      _
    %62 = vsyncpa [#allocation5], 1
    %63 = vsyncpa [#allocation8], 1
    %64 = vsyncpa [#allocation6], 1

</llo_original>
